<compile_context>
chip_gen: v7x
topology: tpu7x:2x2x1
jax: 0.10.0
libtpu: 0.0.40
codegen_flags: <defaults>
</compile_context>

<pallas_src>
import math

import jax
import jax.numpy as jnp
from jax.experimental import pallas as pl
from jax.experimental.pallas import tpu as pltpu


_LANE = 128
_VMEM_LIMIT_CAP = 48 * 2 ** 20     # 0.75 x v7x 64 MiB VMEM; safe on v5e/v6e too.
_RESIDENT_BUDGET = 40 * 2 ** 20    # resident-weight decision threshold (headroom
                                   # under the 48 MiB compiler limit).


def _round_up(x, m):
    return ((x + m - 1) // m) * m


def _sublane(dtype):
    # dtype-dependent sublane packing: 8 rows for 4-byte, 16 for 2-byte, 32 for 1-byte.
    return {4: 8, 2: 16, 1: 32}[jnp.dtype(dtype).itemsize]


def _choose_tile(dim_padded, cap, align):
    """Pick (tile, n_blocks): tile <= cap, multiple of `align`, minimal padding."""
    if dim_padded <= cap:
        return dim_padded, 1
    n_blocks = math.ceil(dim_padded / cap)
    tile = _round_up(math.ceil(dim_padded / n_blocks), align)
    return tile, n_blocks


def _pad2d(a, rows, cols):
    r, c = a.shape
    if r == rows and c == cols:
        return a
    return jnp.pad(a, ((0, rows - r), (0, cols - c)))


# ----------------------------------------------------------------------------
# Kernels
# ----------------------------------------------------------------------------

def _resident_kernel(x_ref, w_ref, b_ref, o_ref):
    # Full-K x block @ resident weight block; bias add + downcast in one shot.
    acc = jnp.dot(x_ref[...], w_ref[...], preferred_element_type=jnp.float32)
    o_ref[...] = (acc + b_ref[...].astype(jnp.float32)).astype(o_ref.dtype)


def _tiled_f32_kernel(x_ref, w_ref, b_ref, o_ref):
    # f32 output: accumulate directly into the resident output block (no scratch).
    k = pl.program_id(2)
    part = jnp.dot(x_ref[...], w_ref[...], preferred_element_type=jnp.float32)

    @pl.when(k == 0)
    def _():
        o_ref[...] = part          # init with first dot result (no zero-fill)

    @pl.when(k != 0)
    def _():
        o_ref[...] += part

    @pl.when(k == pl.num_programs(2) - 1)
    def _():
        o_ref[...] += b_ref[...].astype(jnp.float32)


def _tiled_acc_kernel(x_ref, w_ref, b_ref, o_ref, acc_ref):
    # Non-f32 output: f32 VMEM accumulator, store + downcast once at the end.
    k = pl.program_id(2)
    part = jnp.dot(x_ref[...], w_ref[...], preferred_element_type=jnp.float32)

    @pl.when(k == 0)
    def _():
        acc_ref[...] = part

    @pl.when(k != 0)
    def _():
        acc_ref[...] += part

    @pl.when(k == pl.num_programs(2) - 1)
    def _():
        o_ref[...] = (acc_ref[...] + b_ref[...].astype(jnp.float32)
                      ).astype(o_ref.dtype)


# ----------------------------------------------------------------------------
# Wrapper
# ----------------------------------------------------------------------------

def fold_masked_weight(weight, mask, cond_weight=None):
    """(weight * mask).T (optionally with cond_weight.T appended as extra K rows).

    Hoist/cache the result across calls so the per-call path does not redo the
    mask fold / transpose / concat HBM passes (matters for small-batch,
    per-dimension autoregressive sampling).
    """
    wm = (weight * mask).T                               # [in_f, out_f]
    if cond_weight is not None:
        wm = jnp.concatenate([wm, cond_weight.T], axis=0)  # [in_f+cond_in, out_f]
    return wm


def masked_linear(x, weight, mask, bias, cond_inputs=None, cond_weight=None,
                  folded_weight=None,
                  resident_budget_bytes=_RESIDENT_BUDGET, tk_cap=1024):
    """Pallas implementation of MaskedLinear.forward.

    x:             [..., in_features]
    weight, mask:  [out_features, in_features]
    bias:          [out_features]
    cond_inputs:   [..., cond_in_features]            (optional)
    cond_weight:   [out_features, cond_in_features]   (optional)
    folded_weight: optional pre-computed fold_masked_weight(...) result
                   ([K, out_features]) to skip the per-call weight prep.
    """
    out_f = weight.shape[0]
    if folded_weight is None:
        folded_weight = fold_masked_weight(
            weight, mask, cond_weight if cond_inputs is not None else None)

    lead_shape = x.shape[:-1]
    x2 = x.reshape(-1, x.shape[-1])
    if cond_inputs is not None:
        # Fuse the conditional path as extra contraction columns.
        x2 = jnp.concatenate([x2, cond_inputs.reshape(-1, cond_inputs.shape[-1])],
                             axis=1)

    B, K = x2.shape
    assert folded_weight.shape == (K, out_f)
    out_dtype = jnp.result_type(x.dtype, weight.dtype)

    x_item = jnp.dtype(x2.dtype).itemsize
    w_item = jnp.dtype(folded_weight.dtype).itemsize
    b_item = jnp.dtype(bias.dtype).itemsize
    o_item = jnp.dtype(out_dtype).itemsize

    sub = _sublane(x2.dtype)
    Mp0 = _round_up(B, sub)
    Kp0 = _round_up(K, _LANE)
    Np0 = _round_up(out_f, _LANE)

    # Tile sizes scaled toward the VMEM budget (caps 512 / 512 / tk_cap).
    tm, n_m = _choose_tile(Mp0, 512, sub)
    tn, n_n = _choose_tile(Np0, 512, _LANE)

    # Resident-weight decision: double-buffered x / w / bias / out blocks with
    # the FULL contraction dim resident.
    resident_bytes = 2 * (tm * Kp0 * x_item + Kp0 * tn * w_item
                          + tn * b_item + tm * tn * o_item)
    use_resident = resident_bytes <= resident_budget_bytes

    if use_resident:
        tk, n_k = Kp0, 1
        # v7x megacore: guarantee >= 2 blocks on a parallel axis when it is
        # free (N splits evenly into two 128-aligned halves).
        if n_m == 1 and n_n == 1 and Np0 > _LANE and Np0 % 256 == 0:
            tn, n_n = Np0 // 2, 2
    else:
        tk, n_k = _choose_tile(Kp0, tk_cap, _LANE)

    Mp, Np, Kp = n_m * tm, n_n * tn, n_k * tk

    x_p = _pad2d(x2, Mp, Kp)
    w_p = _pad2d(folded_weight, Kp, Np)
    b_p = _pad2d(bias.reshape(1, out_f), 1, Np)

    # Explicit VMEM budget: double-buffered tiles (+ f32 acc for the non-f32
    # tiled path), 2x headroom, capped at 0.75 x v7x VMEM.
    tile_bytes = 2 * (tm * tk * x_item + tk * tn * w_item
                      + tn * b_item + tm * tn * o_item)
    acc_bytes = 0 if (use_resident or out_dtype == jnp.float32) else tm * tn * 4
    vmem_limit = int(min(_VMEM_LIMIT_CAP,
                         max(32 * 2 ** 20, 2 * (tile_bytes + acc_bytes))))

    flops = 2 * Mp * Np * Kp
    if use_resident:
        w_reads = 1 if n_n == 1 else n_m   # weight re-fetched per M block only if N split
        bytes_accessed = (x_item * Mp * Kp + w_item * Kp * Np * w_reads
                          + b_item * Np + o_item * Mp * Np)
    else:
        bytes_accessed = (x_item * Mp * Kp * n_n + w_item * Kp * Np * n_m
                          + b_item * Np + o_item * Mp * Np)
    cost = pl.CostEstimate(flops=flops, transcendentals=0,
                           bytes_accessed=int(bytes_accessed))

    if use_resident:
        out_padded = pl.pallas_call(
            _resident_kernel,
            out_shape=jax.ShapeDtypeStruct((Mp, Np), out_dtype),
            grid=(n_m, n_n),
            in_specs=[
                pl.BlockSpec((tm, Kp), lambda i, j: (i, 0)),   # x (full K)
                pl.BlockSpec((Kp, tn), lambda i, j: (0, j)),   # resident (W*M).T
                pl.BlockSpec((1, tn), lambda i, j: (0, j)),    # bias
            ],
            out_specs=pl.BlockSpec((tm, tn), lambda i, j: (i, j)),
            compiler_params=pltpu.CompilerParams(
                dimension_semantics=("parallel", "parallel"),
                vmem_limit_bytes=vmem_limit),
            cost_estimate=cost,
        )(x_p, w_p, b_p)
    else:
        if out_dtype == jnp.float32:
            kernel, scratch = _tiled_f32_kernel, []
        else:
            kernel, scratch = _tiled_acc_kernel, [pltpu.VMEM((tm, tn), jnp.float32)]
        out_padded = pl.pallas_call(
            kernel,
            out_shape=jax.ShapeDtypeStruct((Mp, Np), out_dtype),
            grid=(n_m, n_n, n_k),
            in_specs=[
                pl.BlockSpec((tm, tk), lambda i, j, k: (i, k)),   # x
                pl.BlockSpec((tk, tn), lambda i, j, k: (k, j)),   # (W*M).T (+Wc.T)
                pl.BlockSpec((1, tn), lambda i, j, k: (0, j)),    # bias
            ],
            out_specs=pl.BlockSpec((tm, tn), lambda i, j, k: (i, j)),
            scratch_shapes=scratch,
            compiler_params=pltpu.CompilerParams(
                dimension_semantics=("parallel", "parallel", "arbitrary"),
                vmem_limit_bytes=vmem_limit),
            cost_estimate=cost,
        )(x_p, w_p, b_p)

    out = out_padded[:B, :out_f]
    return out.reshape(*lead_shape, out_f)


# ----------------------------------------------------------------------------
# Smoke test
# ----------------------------------------------------------------------------

def _uniform(key, shape, bound):
    return jax.random.uniform(key, shape, jnp.float32, minval=-bound, maxval=bound)


def _made_mask(in_features, out_features):
    # Deterministic MADE-style autoregressive mask:
    # output unit j may see input i iff degree(i) <= degree(j).
    in_deg = jnp.arange(in_features) % in_features
    out_deg = jnp.arange(out_features) % in_features
    return (out_deg[:, None] >= in_deg[None, :]).astype(jnp.float32)   # [out, in]


def _reference(x, weight, mask, bias, cond_inputs=None, cond_weight=None):
    hi = jax.lax.Precision.HIGHEST
    out = jnp.dot(x, (weight * mask).T, precision=hi) + bias
    if cond_inputs is not None:
        out = out + jnp.dot(cond_inputs, cond_weight.T, precision=hi)
    return out


def _make_layer(key, B, in_f, out_f, cond_in=None):
    keys = jax.random.split(key, 5)
    w_bound = 1.0 / math.sqrt(in_f)
    weight = _uniform(keys[0], (out_f, in_f), w_bound)
    bias = _uniform(keys[1], (out_f,), w_bound)
    mask = _made_mask(in_f, out_f)
    x = jax.random.normal(keys[2], (B, in_f), jnp.float32)
    cond_weight = cond = None
    if cond_in is not None:
        cond_weight = _uniform(keys[3], (out_f, cond_in), 1.0 / math.sqrt(cond_in))
        cond = jax.random.normal(keys[4], (B, cond_in), jnp.float32)
    return x, weight, mask, bias, cond, cond_weight


if __name__ == "__main__":
    key = jax.random.PRNGKey(0)
    k1, k2, k3 = jax.random.split(key, 3)

    # --- Test 1: tiny MADE layer, plain + conditional (single-block resident
    #     path); folded weight prepared once and reused (cached-weight usage).
    x, w, m, b, cond, wc = _make_layer(k1, B=8, in_f=32, out_f=32, cond_in=16)
    folded_plain = fold_masked_weight(w, m)
    folded_cond = fold_masked_weight(w, m, wc)

    out_plain = jax.block_until_ready(
        masked_linear(x, w, m, b, folded_weight=folded_plain))
    out_cond = jax.block_until_ready(
        masked_linear(x, w, m, b, cond, wc, folded_weight=folded_cond))

    assert out_plain.shape == (8, 32) and out_cond.shape == (8, 32)
    assert jnp.allclose(out_plain, _reference(x, w, m, b), atol=1e-5, rtol=1e-5)
    assert jnp.allclose(out_cond, _reference(x, w, m, b, cond, wc),
                        atol=1e-5, rtol=1e-5)

    # --- Test 2: medium layer, exercises the resident path with the
    #     megacore N split (Np0=256 -> two 128-wide parallel N blocks).
    x2, w2, m2, b2, _, _ = _make_layer(k2, B=16, in_f=300, out_f=256)
    out2 = jax.block_until_ready(masked_linear(x2, w2, m2, b2))
    assert out2.shape == (16, 256)
    assert jnp.allclose(out2, _reference(x2, w2, m2, b2), atol=1e-3, rtol=1e-3)

    # --- Test 3: force the tiled-K reduction path (tiny resident budget and a
    #     small tk cap) to cover the (M, N, K) kernel with a 4-step K grid.
    x3, w3, m3, b3, _, _ = _make_layer(k3, B=32, in_f=512, out_f=256)
    out3 = jax.block_until_ready(
        masked_linear(x3, w3, m3, b3,
                      resident_budget_bytes=64 * 1024, tk_cap=128))
    assert out3.shape == (32, 256)
    assert jnp.allclose(out3, _reference(x3, w3, m3, b3), atol=1e-3, rtol=1e-3)

    print("KERNEL_OK")
</pallas_src>

<mosaic_0001>
module attributes {stable_mosaic.version = 11 : i64} {
  func.func @_resident_kernel(%arg0: i32, %arg1: i32, %arg2: memref<8x128xf32, #tpu.memory_space<vmem>>, %arg3: memref<128x128xf32, #tpu.memory_space<vmem>>, %arg4: memref<1x128xf32, #tpu.memory_space<vmem>>, %arg5: memref<8x128xf32, #tpu.memory_space<vmem>>) attributes {dimension_semantics = [#tpu.dimension_semantics<parallel>, #tpu.dimension_semantics<parallel>], iteration_bounds = array<i64: 1, 1>, scalar_prefetch = 0 : i64, scratch_operands = 0 : i64, tpu.core_type = #tpu.core_type<tc>, window_params = [{transform_indices = @transform_0, window_bounds = array<i64: 8, 128>}, {transform_indices = @transform_1, window_bounds = array<i64: 128, 128>}, {transform_indices = @transform_2, window_bounds = array<i64: 1, 128>}, {transform_indices = @transform_3, window_bounds = array<i64: 8, 128>}]} {
    %c0 = arith.constant 0 : index
    %c0_0 = arith.constant 0 : index
    %0 = vector.load %arg2[%c0, %c0_0] : memref<8x128xf32, #tpu.memory_space<vmem>>, vector<8x128xf32>
    %c0_1 = arith.constant 0 : index
    %c0_2 = arith.constant 0 : index
    %1 = vector.load %arg3[%c0_1, %c0_2] : memref<128x128xf32, #tpu.memory_space<vmem>>, vector<128x128xf32>
    %cst = arith.constant dense<0.000000e+00> : vector<8x128xf32>
    %2 = tpu.matmul %0, %1, %cst {dimension_numbers = #tpu.dot_dimension_numbers<[1], [0], [0], [1], [0, 0, 1, 1], [], []>} : vector<8x128xf32>, vector<128x128xf32>, vector<8x128xf32> -> vector<8x128xf32>
    %c0_3 = arith.constant 0 : index
    %c0_4 = arith.constant 0 : index
    %3 = vector.load %arg4[%c0_3, %c0_4] : memref<1x128xf32, #tpu.memory_space<vmem>>, vector<1x128xf32>
    %4 = vector.broadcast %3 : vector<1x128xf32> to vector<8x128xf32>
    %5 = arith.addf %2, %4 : vector<8x128xf32>
    %c0_5 = arith.constant 0 : index
    %c0_6 = arith.constant 0 : index
    %6 = vector.load %arg5[%c0_5, %c0_6] : memref<8x128xf32, #tpu.memory_space<vmem>>, vector<8x128xf32>
    tpu.vector_store %arg5[%c0_5, %c0_6], %5 {strides = array<i32>} : memref<8x128xf32, #tpu.memory_space<vmem>>, vector<8x128xf32>,
    return
  }
  func.func @transform_0(%arg0: i32, %arg1: i32) -> (i32, i32) {
    %c0_i32 = arith.constant 0 : i32
    %c0_i32_0 = arith.constant 0 : i32
    return %arg0, %c0_i32 : i32, i32
  }
  func.func @transform_1(%arg0: i32, %arg1: i32) -> (i32, i32) {
    %c0_i32 = arith.constant 0 : i32
    %c0_i32_0 = arith.constant 0 : i32
    return %c0_i32, %arg1 : i32, i32
  }
  func.func @transform_2(%arg0: i32, %arg1: i32) -> (i32, i32) {
    %c0_i32 = arith.constant 0 : i32
    %c0_i32_0 = arith.constant 0 : i32
    return %c0_i32, %arg1 : i32, i32
  }
  func.func @transform_3(%arg0: i32, %arg1: i32) -> (i32, i32) {
    %c0_i32 = arith.constant 0 : i32
    return %arg0, %arg1 : i32, i32
  }
}

</mosaic_0001>

<llo_original>
// kernel: tpu_custom_call.1
$region0: #{tpu_custom_call.1}
  #allocation0 [shape = 'u32[]', space=smem, size = 0x4, offset = 0x4, fixed_abs, tag = 'smem constant byte address 0x4 - core index']
  #allocation1 [shape = 'u32[144,128]{1,0:T(1,128)}', space=vmem, size = 0x12000, scoped, tag = 'internal scratch']
  %s0 = inlined_call_operand.hbm [shape: f32[8,128], index: 0, kind: input, shape index: {}]
  %s1 = inlined_call_operand.hbm [shape: f32[128,128], index: 1, kind: input, shape index: {}]
  %s2 = inlined_call_operand.vmem [shape: f32[1,128], index: 2, kind: input, shape index: {}]
  %s3 = inlined_call_operand.hbm [shape: f32[8,128], index: 3, kind: output, shape index: {}]
  %s4 = sld [smem:[#allocation0]]
  $region30: #{tpu_custom_call.1} parent=0
    _
  %s6 = ssub.s32 1, %s4
  %s7 = scalar_select 0, %s6, %s4
  $region1: #{tpu_custom_call.1} parent=0
    #allocation2 [shape = 'u8[4096]{0}', space=vmem, size = 0x1000, scoped, tag = 'input window, operand 0, single buffered']
    #allocation3 [shape = 's32[1]{0}', space=sflag, size = 0x4, scoped, tag = 'scoped memory for tpu_custom_call.1']
    #allocation4 [shape = 's32[1]{0}', space=sflag, size = 0x4, scoped, tag = 'scoped memory for tpu_custom_call.1']
    #allocation5 [shape = 'u8[65536]{0}', space=vmem, size = 0x10000, scoped, tag = 'input window, operand 1, single buffered']
    #allocation6 [shape = 's32[1]{0}', space=sflag, size = 0x4, scoped, tag = 'scoped memory for tpu_custom_call.1']
    #allocation7 [shape = 'u8[4096]{0}', space=vmem, size = 0x1000, scoped, tag = 'output window, operand 0, single buffered']
    %8 = vsyncpa [#allocation3], 0
    %9 = vsyncpa [#allocation6], 0
    %10 = vsyncpa [#allocation4], 0
    // Predicated region
    $region2: #{tpu_custom_call.1} parent=1 // pred_check
      _
    $region3: #{tpu_custom_call.1} parent=1 // pred_check_branch
      %12 = sbr.rel (0) target = $region5
    $region4: #{tpu_custom_call.1} parent=1 // pred_region
      %s14 = ssub.s32 128, 128
      %15 = vsyncadd [#allocation3], %s14
      %s17 = sshll.u32 [#allocation2], 4
      %s18 = int_to_ptr.vmem [resolvable:$true] %s17
      %20 = dma.hbm_to_vmem [thread:$0]  %s0, 128, %s18, [#allocation3]
    $region5: #{tpu_custom_call.1} parent=1 // pred_fallthru
      _
    // Predicated region
    $region6: #{tpu_custom_call.1} parent=1 // pred_check
      _
    $region7: #{tpu_custom_call.1} parent=1 // pred_check_branch
      %22 = sbr.rel (0) target = $region9
    $region8: #{tpu_custom_call.1} parent=1 // pred_region
      %s24 = ssub.s32 2048, 2048
      %25 = vsyncadd [#allocation6], %s24
      %s26 = sshll.u32 [#allocation5], 4
      %s27 = int_to_ptr.vmem [resolvable:$true] %s26
      %32 = dma.hbm_to_vmem [thread:$0]  %s1, 2048, %s27, [#allocation6], 128, 128, 8
    $region9: #{tpu_custom_call.1} parent=1 // pred_fallthru
      _
    // Predicated region
    $region10: #{tpu_custom_call.1} parent=1 // pred_check
      _
    $region11: #{tpu_custom_call.1} parent=1 // pred_check_branch
      %34 = sbr.rel (0) target = $region13
    $region12: #{tpu_custom_call.1} parent=1 // pred_region
      _
    $region13: #{tpu_custom_call.1} parent=1 // pred_fallthru
      _
    // Predicated region
    $region14: #{tpu_custom_call.1} parent=1 // pred_check
      _
    $region15: #{tpu_custom_call.1} parent=1 // pred_check_branch
      %36 = sbr.rel (0) target = $region17
    $region16: #{tpu_custom_call.1} parent=1 // pred_region
      %37 = dma.done [#allocation3], 128
    $region17: #{tpu_custom_call.1} parent=1 // pred_fallthru
      _
    // Predicated region
    $region18: #{tpu_custom_call.1} parent=1 // pred_check
      _
    $region19: #{tpu_custom_call.1} parent=1 // pred_check_branch
      %39 = sbr.rel (0) target = $region21
    $region20: #{tpu_custom_call.1} parent=1 // pred_region
      %40 = dma.done [#allocation6], 2048
    $region21: #{tpu_custom_call.1} parent=1 // pred_fallthru
      _
    %v41 = vld [vmem:[#allocation2] sm:$0xff]
    %v42 = vld [vmem:[#allocation5] sm:$0xff]
    %v43 = vld [vmem:[#allocation5 + $0x8] sm:$0xff]
    %v44 = vld [vmem:[#allocation5 + $0x10] sm:$0xff]
    %v45 = vld [vmem:[#allocation5 + $0x18] sm:$0xff]
    %v46 = vld [vmem:[#allocation5 + $0x20] sm:$0xff]
    %v47 = vld [vmem:[#allocation5 + $0x28] sm:$0xff]
    %v48 = vld [vmem:[#allocation5 + $0x30] sm:$0xff]
    %v49 = vld [vmem:[#allocation5 + $0x38] sm:$0xff]
    %v50 = vld [vmem:[#allocation5 + $0x40] sm:$0xff]
    %v51 = vld [vmem:[#allocation5 + $0x48] sm:$0xff]
    %v52 = vld [vmem:[#allocation5 + $0x50] sm:$0xff]
    %v53 = vld [vmem:[#allocation5 + $0x58] sm:$0xff]
    %v54 = vld [vmem:[#allocation5 + $0x60] sm:$0xff]
    %v55 = vld [vmem:[#allocation5 + $0x68] sm:$0xff]
    %v56 = vld [vmem:[#allocation5 + $0x70] sm:$0xff]
    %v57 = vld [vmem:[#allocation5 + $0x78] sm:$0xff]
    %v58 = vld [vmem:[%s2] sm:$0x1]
    %v60 = vlaneseq
    %v61 = vshrl.u32 %v60, 7
    %v62 = vsub.s32 0, %v61
    %v63 = vrot.slane %v58, %v62
    %65 = vmatprep.subr.mxu0 0.0
    %66 = vmatpush1.msra.mxu0 %v42
    %67 = vmatprep.subr.mxu0 0.0
    %68 = vmatpush1.msra.mxu0 %v43
    %69 = vmatprep.subr.mxu0 0.0
    %70 = vmatpush1.msra.mxu0 %v44
    %71 = vmatprep.subr.mxu0 0.0
    %72 = vmatpush1.msra.mxu0 %v45
    %73 = vmatprep.subr.mxu0 0.0
    %74 = vmatpush1.msra.mxu0 %v46
    %75 = vmatprep.subr.mxu0 0.0
    %76 = vmatpush1.msra.mxu0 %v47
    %77 = vmatprep.subr.mxu0 0.0
    %78 = vmatpush1.msra.mxu0 %v48
    %79 = vmatprep.subr.mxu0 0.0
    %80 = vmatpush1.msra.mxu0 %v49
    %81 = vmatprep.subr.mxu0 0.0
    %82 = vmatpush1.msra.mxu0 %v50
    %83 = vmatprep.subr.mxu0 0.0
    %84 = vmatpush1.msra.mxu0 %v51
    %85 = vmatprep.subr.mxu0 0.0
    %86 = vmatpush1.msra.mxu0 %v52
    %87 = vmatprep.subr.mxu0 0.0
    %88 = vmatpush1.msra.mxu0 %v53
    %89 = vmatprep.subr.mxu0 0.0
    %90 = vmatpush1.msra.mxu0 %v54
    %91 = vmatprep.subr.mxu0 0.0
    %92 = vmatpush1.msra.mxu0 %v55
    %93 = vmatprep.subr.mxu0 0.0
    %94 = vmatpush1.msra.mxu0 %v56
    %95 = vmatprep.subr.mxu0 0.0
    %96 = vmatpush1.msra.mxu0 %v57
    %97 = vmatprep.subr.mxu0 0.0
    %98 = vmatpush1.msra.mxu0 0.0
    %99 = vmatprep.subr.mxu0 0.0
    %100 = vmatpush1.msra.mxu0 0.0
    %101 = vmatprep.subr.mxu0 0.0
    %102 = vmatpush1.msra.mxu0 0.0
    %103 = vmatprep.subr.mxu0 0.0
    %104 = vmatpush1.msra.mxu0 0.0
    %105 = vmatprep.subr.mxu0 0.0
    %106 = vmatpush1.msra.mxu0 0.0
    %107 = vmatprep.subr.mxu0 0.0
    %108 = vmatpush1.msra.mxu0 0.0
    %109 = vmatprep.subr.mxu0 0.0
    %110 = vmatpush1.msra.mxu0 0.0
    %111 = vmatprep.subr.mxu0 0.0
    %112 = vmatpush1.msra.mxu0 0.0
    %113 = vmatprep.subr.mxu0 0.0
    %114 = vmatpush1.msra.mxu0 0.0
    %115 = vmatprep.subr.mxu0 0.0
    %116 = vmatpush1.msra.mxu0 0.0
    %117 = vmatprep.subr.mxu0 0.0
    %118 = vmatpush1.msra.mxu0 0.0
    %119 = vmatprep.subr.mxu0 0.0
    %120 = vmatpush1.msra.mxu0 0.0
    %121 = vmatprep.subr.mxu0 0.0
    %122 = vmatpush1.msra.mxu0 0.0
    %123 = vmatprep.subr.mxu0 0.0
    %124 = vmatpush1.msra.mxu0 0.0
    %125 = vmatprep.subr.mxu0 0.0
    %126 = vmatpush1.msra.mxu0 0.0
    %127 = vmatprep.subr.mxu0 0.0
    %128 = vmatpush1.msra.mxu0 0.0
    %129 = vmatprep.mubr.f32.mxu0 0.0
    %130 = vmatmul.mubr.f32.gmra.mrb[0].mxu0 %v41
    %v131 = vpop.f32.mrb[0].mxu0
    %v132 = vadd.f32 %v63, %v131
    %v133 = vpop.f32.mrb[0].mxu0
    %134 = vdwg.mxu0
    %135 = vst [vmem:[#allocation7] sm:$0xff] %v132
    // Predicated region
    $region22: #{tpu_custom_call.1} parent=1 // pred_check
      _
    $region23: #{tpu_custom_call.1} parent=1 // pred_check_branch
      %137 = sbr.rel (0) target = $region25
    $region24: #{tpu_custom_call.1} parent=1 // pred_region
      %s139 = ssub.s32 128, 128
      %140 = vsyncadd [#allocation4], %s139
      %s142 = sshll.u32 [#allocation7], 4
      %s143 = int_to_ptr.vmem [resolvable:$true] %s142
      %145 = dma.vmem_to_hbm [thread:$0]  %s143, 128, %s3, [#allocation4]
    $region25: #{tpu_custom_call.1} parent=1 // pred_fallthru
      _
    // Predicated region
    $region26: #{tpu_custom_call.1} parent=1 // pred_check
      _
    $region27: #{tpu_custom_call.1} parent=1 // pred_check_branch
      %147 = sbr.rel (0) target = $region29
    $region28: #{tpu_custom_call.1} parent=1 // pred_region
      %148 = dma.done [#allocation4], 128
    $region29: #{tpu_custom_call.1} parent=1 // pred_fallthru
      _
    %149 = vsyncpa [#allocation3], 1
    %150 = vsyncpa [#allocation6], 1
    %151 = vsyncpa [#allocation4], 1

</llo_original>
